<compile_context>
chip_gen: v5e
topology: v5e:2x2
jax: 0.10.0
libtpu: 0.0.40
codegen_flags: <defaults>
</compile_context>

<pallas_src>
import functools

import jax
import jax.numpy as jnp
from jax.experimental import pallas as pl
from jax.experimental.pallas import tpu as pltpu

HIDDEN = 64
OUT_FEATURES = 1


def _round_up(x, m):
    return ((x + m - 1) // m) * m


# --------------------------------- kernels ----------------------------------


def _fc1_fused_kernel(x_ref, w1_ref, b1_ref, w3r_ref, b3_ref, o_ref, acc_ref):
    """Single-TensorCore path (v5e/v6e). Grid = (k_steps,).

    x_ref  : [B, TK]      bf16 tile of the input
    w1_ref : [TK, 64]     bf16 tile of fc1 weight (pre-transposed, contiguous)
    b1_ref : [1, 64]      f32 fc1 bias
    w3r_ref: [1, 64]      f32 fc3 weight (torch layout [out=1, in=64])
    b3_ref : [1, 1]       f32 fc3 bias
    o_ref  : [B, 1]       f32 final output (written on the last K step)
    acc_ref: [B, 64]      f32 accumulator (VMEM scratch, persists across steps)
    """
    k = pl.program_id(0)

    @pl.when(k == 0)
    def _():
        acc_ref[...] = jnp.zeros_like(acc_ref)

    # fc1 partial matmul on the MXU: bf16 inputs, f32 accumulation.
    acc_ref[...] += jnp.dot(
        x_ref[...], w1_ref[...], preferred_element_type=jnp.float32
    )

    @pl.when(k == pl.num_programs(0) - 1)
    def _():
        # Fused epilogue: bias + LeakyReLU(0.2) + fc3 (out dim is 1, so fc3 is
        # just a broadcast-multiply + lane reduction -> VPU + XLU, no MXU).
        h = acc_ref[...] + b1_ref[...]                       # [B, 64]
        h = jnp.where(h >= 0, h, 0.2 * h)                    # LeakyReLU(0.2)
        y = jnp.sum(h * w3r_ref[...], axis=-1, keepdims=True)  # [B, 1]
        o_ref[...] = (y + b3_ref[...]).astype(o_ref.dtype)


def _fc1_partial_kernel(x_ref, w1_ref, o_ref, acc_ref):
    """Two-TensorCore path (v7x). Grid = (num_k_shards, k_steps).

    Emits per-shard partial pre-activation sums [1, B, 64]; the tiny nonlinear
    epilogue (which cannot be distributed across shards) runs in plain JAX.
    """
    k = pl.program_id(1)

    @pl.when(k == 0)
    def _():
        acc_ref[...] = jnp.zeros_like(acc_ref)

    acc_ref[...] += jnp.dot(
        x_ref[...], w1_ref[...], preferred_element_type=jnp.float32
    )

    @pl.when(k == pl.num_programs(1) - 1)
    def _():
        o_ref[...] = acc_ref[...][None, :, :]


# ------------------------------ configuration -------------------------------


def select_config(in_features=None):
    """Generation-aware (tk, num_k_shards, vmem_cap_bytes)."""
    kind = ""
    try:
        kind = jax.devices()[0].device_kind.lower()
    except Exception:
        pass
    is_v7 = "v7" in kind

    vmem_cap = None
    try:
        vmem_cap = int(pltpu.get_tpu_info().vmem_capacity_bytes)
    except Exception:
        vmem_cap = None
    if not vmem_cap or vmem_cap <= 0:
        vmem_cap = (64 << 20) if is_v7 else (128 << 20)

    # 2 TensorCores (megacore) only on v7x -> split the K reduction in two.
    num_k_shards = 2 if is_v7 else 1

    # Biggest tk the VMEM budget allows, capped at the per-generation target.
    # Per tk row: w1 tile lane-padded to 128 lanes (bf16) + x tile sublane-
    # padded to 16 rows (bf16), both double-buffered.
    budget = int(0.85 * vmem_cap) - (8 << 20)
    bytes_per_row = 2 * (128 * 2 + 16 * 2)
    tk_cap = max((budget // bytes_per_row) // 512 * 512, 512)
    tk = min(49152 if is_v7 else 65536, tk_cap)

    # Don't pad a small problem up to a huge tile.
    if in_features is not None:
        per_shard = (in_features + num_k_shards - 1) // num_k_shards
        tk = max(min(tk, _round_up(per_shard, 512)), 512)
    return tk, num_k_shards, vmem_cap


def prepare_fc1_weight(w1_t, *, tk, num_k_shards, dtype=jnp.bfloat16):
    """One-time weight prep (outside the hot path): cast to bf16 and zero-pad
    K up to a multiple of tk * num_k_shards so any tk works with the real K."""
    kmult = tk * num_k_shards
    k = w1_t.shape[0]
    pad = (-k) % kmult
    w = w1_t.astype(dtype)
    if pad:
        w = jnp.pad(w, ((0, pad), (0, 0)))
    return w


# --------------------------------- forward ----------------------------------


@functools.partial(jax.jit, static_argnames=("tk", "num_k_shards"))
def predictor_forward(x, w1_p, b1, w3_t, b3, *, tk, num_k_shards):
    """x: [B, K] f32, w1_p: [Kp, 64] bf16 (pre-padded) -> [B, 1] f32."""
    B, K = x.shape
    Kp, hidden = w1_p.shape
    out_f = w3_t.shape[1]
    assert Kp % (tk * num_k_shards) == 0, (
        "w1_p must be padded with prepare_fc1_weight(tk, num_k_shards)"
    )
    k_steps = Kp // (tk * num_k_shards)

    # Stream x in the same (bf16) dtype as the weight; zero-pad ragged K.
    x_p = x.astype(w1_p.dtype)
    if Kp != K:
        x_p = jnp.pad(x_p, ((0, 0), (0, Kp - K)))

    # Generation-aware VMEM cap (trace-time device query).
    try:
        vmem_cap = int(pltpu.get_tpu_info().vmem_capacity_bytes)
    except Exception:
        vmem_cap = 128 << 20
    itemsize = jnp.dtype(w1_p.dtype).itemsize
    w1_buf = tk * 128 * itemsize                       # lane-padded to 128
    x_buf = _round_up(max(B, 1), 16) * tk * itemsize   # sublane-padded to 16
    vmem_limit = int(
        min(max(2 * (w1_buf + x_buf) + (8 << 20), 32 << 20), int(0.85 * vmem_cap))
    )

    cost = pl.CostEstimate(
        flops=2 * B * Kp * hidden + 2 * B * hidden * out_f,
        transcendentals=0,
        bytes_accessed=int(
            x_p.size * itemsize
            + w1_p.size * itemsize
            + num_k_shards * B * hidden * 4
        ),
    )

    if num_k_shards == 1 and out_f == 1:
        # Fully fused single-core path (v5e/v6e): kernel emits [B, 1] directly.
        w3r = jnp.transpose(w3_t).astype(jnp.float32)   # [1, 64] torch layout
        return pl.pallas_call(
            _fc1_fused_kernel,
            out_shape=jax.ShapeDtypeStruct((B, out_f), jnp.float32),
            grid_spec=pltpu.PrefetchScalarGridSpec(
                num_scalar_prefetch=0,
                grid=(k_steps,),
                in_specs=[
                    pl.BlockSpec((B, tk), lambda k: (0, k)),
                    pl.BlockSpec((tk, hidden), lambda k: (k, 0)),
                    pl.BlockSpec((1, hidden), lambda k: (0, 0)),
                    pl.BlockSpec((1, hidden), lambda k: (0, 0)),
                    pl.BlockSpec((1, out_f), lambda k: (0, 0)),
                ],
                out_specs=pl.BlockSpec((B, out_f), lambda k: (0, 0)),
                scratch_shapes=[pltpu.VMEM((B, hidden), jnp.float32)],
            ),
            compiler_params=pltpu.CompilerParams(
                dimension_semantics=("arbitrary",),
                vmem_limit_bytes=vmem_limit,
            ),
            cost_estimate=cost,
        )(x_p, w1_p, b1.astype(jnp.float32), w3r, b3.astype(jnp.float32))

    # v7x path: K reduction sharded over the 2 TensorCores; tiny nonlinear
    # combine + epilogue in plain JAX (LeakyReLU can't distribute over shards).
    # TODO(synk): verify in a profile that the leading "parallel" axis actually
    # splits across the two v7x TensorCores; if not, switch to CORE_PARALLEL.
    partials = pl.pallas_call(
        _fc1_partial_kernel,
        out_shape=jax.ShapeDtypeStruct((num_k_shards, B, hidden), jnp.float32),
        grid_spec=pltpu.PrefetchScalarGridSpec(
            num_scalar_prefetch=0,
            grid=(num_k_shards, k_steps),
            in_specs=[
                pl.BlockSpec((B, tk), lambda s, k: (0, s * k_steps + k)),
                pl.BlockSpec((tk, hidden), lambda s, k: (s * k_steps + k, 0)),
            ],
            out_specs=pl.BlockSpec((1, B, hidden), lambda s, k: (s, 0, 0)),
            scratch_shapes=[pltpu.VMEM((B, hidden), jnp.float32)],
        ),
        compiler_params=pltpu.CompilerParams(
            dimension_semantics=("parallel", "arbitrary"),
            vmem_limit_bytes=vmem_limit,
        ),
        cost_estimate=cost,
    )(x_p, w1_p)

    h = jnp.sum(partials, axis=0) + b1                  # [B, 64] f32
    h = jnp.where(h >= 0, h, 0.2 * h)                   # LeakyReLU(0.2)
    return h @ w3_t.astype(jnp.float32) + b3            # [B, 1]


# ------------------------------ init / reference ----------------------------


def init_params(key, in_features, hidden=HIDDEN, out_features=OUT_FEATURES):
    """Deterministic init mimicking torch.nn.Linear's U(-1/sqrt(fan_in), ...)."""
    k1, k2, k3, k4 = jax.random.split(key, 4)
    bound1 = 1.0 / jnp.sqrt(in_features)
    bound3 = 1.0 / jnp.sqrt(hidden)
    # fc1 weight stored already transposed to [K, N] for contiguous streaming.
    w1_t = jax.random.uniform(k1, (in_features, hidden), jnp.float32, -bound1, bound1)
    b1 = jax.random.uniform(k2, (1, hidden), jnp.float32, -bound1, bound1)
    w3_t = jax.random.uniform(k3, (hidden, out_features), jnp.float32, -bound3, bound3)
    b3 = jax.random.uniform(k4, (1, out_features), jnp.float32, -bound3, bound3)
    return w1_t, b1, w3_t, b3


def reference_forward(x, w1_t, b1, w3_t, b3):
    h = x @ w1_t + b1
    h = jnp.where(h >= 0, h, 0.2 * h)
    return h @ w3_t + b3


if __name__ == "__main__":
    # Small demo shapes (the real module uses IN_FEATURES = 1306624 with the
    # auto-selected tk; here IN_FEATURES is deliberately NOT a multiple of tk
    # to exercise the ragged-K zero-padding path).
    B = 2
    IN_FEATURES = 5000

    key = jax.random.PRNGKey(0)
    kx, kp = jax.random.split(key)
    x = jax.random.normal(kx, (B, IN_FEATURES), jnp.float32)
    w1_t, b1, w3_t, b3 = init_params(kp, IN_FEATURES)

    tk, num_k_shards, _ = select_config(IN_FEATURES)
    # Keep the demo tile small enough to exercise multiple K steps + init /
    # finalize pl.when branches (full-size runs use the auto-selected tk).
    tk = min(tk, 2048)

    # One-time weight prep (bf16 cast + zero-pad K), outside the hot path.
    w1_p = prepare_fc1_weight(w1_t, tk=tk, num_k_shards=num_k_shards)

    out = predictor_forward(
        x, w1_p, b1, w3_t, b3, tk=tk, num_k_shards=num_k_shards
    )
    out = jax.block_until_ready(out)

    # Reference at the same streamed (bf16) input precision; accumulation is
    # f32 in both paths, so they should agree tightly.
    x_bf = x.astype(jnp.bfloat16).astype(jnp.float32)
    w1_bf = w1_p[:IN_FEATURES].astype(jnp.float32)
    ref = reference_forward(x_bf, w1_bf, b1, w3_t, b3)

    assert out.shape == (B, 1), out.shape
    assert jnp.allclose(out, ref, atol=5e-3, rtol=5e-3), (out, ref)

    print("KERNEL_OK")
</pallas_src>

<mosaic_0001>
module attributes {stable_mosaic.version = 11 : i64} {
  func.func @_fc1_fused_kernel(%arg0: i32, %arg1: memref<2x2048xbf16, #tpu.memory_space<vmem>>, %arg2: memref<2048x64xbf16, #tpu.memory_space<vmem>>, %arg3: memref<1x64xf32, #tpu.memory_space<vmem>>, %arg4: memref<1x64xf32, #tpu.memory_space<vmem>>, %arg5: memref<1x1xf32, #tpu.memory_space<vmem>>, %arg6: memref<2x1xf32, #tpu.memory_space<vmem>>, %arg7: memref<2x64xf32, #tpu.memory_space<vmem>>) attributes {dimension_semantics = [#tpu.dimension_semantics<arbitrary>], iteration_bounds = array<i64: 3>, scalar_prefetch = 0 : i64, scratch_operands = 1 : i64, tpu.core_type = #tpu.core_type<tc>, window_params = [{transform_indices = @transform_0, window_bounds = array<i64: 2, 2048>}, {transform_indices = @transform_1, window_bounds = array<i64: 2048, 64>}, {pipeline_mode = #tpu.pipeline_mode<synchronous>, transform_indices = @transform_2, window_bounds = array<i64: 1, 64>}, {pipeline_mode = #tpu.pipeline_mode<synchronous>, transform_indices = @transform_3, window_bounds = array<i64: 1, 64>}, {pipeline_mode = #tpu.pipeline_mode<synchronous>, transform_indices = @transform_4, window_bounds = array<i64: 1, 1>}, {pipeline_mode = #tpu.pipeline_mode<synchronous>, transform_indices = @transform_5, window_bounds = array<i64: 2, 1>}]} {
    %c0_i32 = arith.constant 0 : i32
    %0 = arith.cmpi eq, %arg0, %c0_i32 : i32
    %1 = arith.extui %0 : i1 to i32
    %c0_i32_0 = arith.constant 0 : i32
    %2 = arith.cmpi ne, %1, %c0_i32_0 : i32
    scf.if %2 {
      %cst_9 = arith.constant 0.000000e+00 : f32
      %12 = vector.broadcast %cst_9 : f32 to vector<2x64xf32>
      %c0_10 = arith.constant 0 : index
      %c0_11 = arith.constant 0 : index
      %13 = vector.load %arg7[%c0_10, %c0_11] : memref<2x64xf32, #tpu.memory_space<vmem>>, vector<2x64xf32>
      tpu.vector_store %arg7[%c0_10, %c0_11], %12 {strides = array<i32>} : memref<2x64xf32, #tpu.memory_space<vmem>>, vector<2x64xf32>,
    } else {
    }
    %c0 = arith.constant 0 : index
    %c0_1 = arith.constant 0 : index
    %3 = vector.load %arg7[%c0, %c0_1] : memref<2x64xf32, #tpu.memory_space<vmem>>, vector<2x64xf32>
    %c0_2 = arith.constant 0 : index
    %c0_3 = arith.constant 0 : index
    %4 = vector.load %arg1[%c0_2, %c0_3] : memref<2x2048xbf16, #tpu.memory_space<vmem>>, vector<2x2048xbf16>
    %c0_4 = arith.constant 0 : index
    %c0_5 = arith.constant 0 : index
    %5 = vector.load %arg2[%c0_4, %c0_5] : memref<2048x64xbf16, #tpu.memory_space<vmem>>, vector<2048x64xbf16>
    %cst = arith.constant dense<0.000000e+00> : vector<2x64xf32>
    %6 = tpu.matmul %4, %5, %cst {dimension_numbers = #tpu.dot_dimension_numbers<[1], [0], [0], [1], [0, 0, 1, 1], [], []>} : vector<2x2048xbf16>, vector<2048x64xbf16>, vector<2x64xf32> -> vector<2x64xf32>
    %7 = arith.addf %3, %6 : vector<2x64xf32>
    %c0_6 = arith.constant 0 : index
    %c0_7 = arith.constant 0 : index
    %8 = vector.load %arg7[%c0_6, %c0_7] : memref<2x64xf32, #tpu.memory_space<vmem>>, vector<2x64xf32>
    tpu.vector_store %arg7[%c0_6, %c0_7], %7 {strides = array<i32>} : memref<2x64xf32, #tpu.memory_space<vmem>>, vector<2x64xf32>,
    %c2_i32 = arith.constant 2 : i32
    %9 = arith.cmpi eq, %arg0, %c2_i32 : i32
    %10 = arith.extui %9 : i1 to i32
    %c0_i32_8 = arith.constant 0 : i32
    %11 = arith.cmpi ne, %10, %c0_i32_8 : i32
    scf.if %11 {
      %c0_9 = arith.constant 0 : index
      %c0_10 = arith.constant 0 : index
      %12 = vector.load %arg7[%c0_9, %c0_10] : memref<2x64xf32, #tpu.memory_space<vmem>>, vector<2x64xf32>
      %c0_11 = arith.constant 0 : index
      %c0_12 = arith.constant 0 : index
      %13 = vector.load %arg3[%c0_11, %c0_12] : memref<1x64xf32, #tpu.memory_space<vmem>>, vector<1x64xf32>
      %14 = vector.broadcast %13 : vector<1x64xf32> to vector<2x64xf32>
      %15 = arith.addf %12, %14 : vector<2x64xf32>
      %cst_13 = arith.constant 0.000000e+00 : f32
      %16 = vector.broadcast %cst_13 : f32 to vector<2x64xf32>
      %17 = arith.cmpf oge, %15, %16 : vector<2x64xf32>
      %cst_14 = arith.constant 2.000000e-01 : f32
      %18 = vector.broadcast %cst_14 : f32 to vector<2x64xf32>
      %19 = arith.mulf %18, %15 : vector<2x64xf32>
      %20 = arith.select %17, %15, %19 : vector<2x64xi1>, vector<2x64xf32>
      %c0_15 = arith.constant 0 : index
      %c0_16 = arith.constant 0 : index
      %21 = vector.load %arg4[%c0_15, %c0_16] : memref<1x64xf32, #tpu.memory_space<vmem>>, vector<1x64xf32>
      %22 = vector.broadcast %21 : vector<1x64xf32> to vector<2x64xf32>
      %23 = arith.mulf %20, %22 : vector<2x64xf32>
      %cst_17 = arith.constant dense<0.000000e+00> : vector<2xf32>
      %24 = vector.multi_reduction <add>, %23, %cst_17 [1] : vector<2x64xf32> to vector<2xf32>
      %25 = vector.shape_cast %24 : vector<2xf32> to vector<2x1xf32>
      %c0_18 = arith.constant 0 : index
      %c0_19 = arith.constant 0 : index
      %26 = vector.load %arg5[%c0_18, %c0_19] : memref<1x1xf32, #tpu.memory_space<vmem>>, vector<1x1xf32>
      %27 = vector.broadcast %26 : vector<1x1xf32> to vector<2x1xf32>
      %28 = arith.addf %25, %27 : vector<2x1xf32>
      %c0_20 = arith.constant 0 : index
      %c0_21 = arith.constant 0 : index
      %29 = vector.load %arg6[%c0_20, %c0_21] : memref<2x1xf32, #tpu.memory_space<vmem>>, vector<2x1xf32>
      tpu.vector_store %arg6[%c0_20, %c0_21], %28 {strides = array<i32>} : memref<2x1xf32, #tpu.memory_space<vmem>>, vector<2x1xf32>,
    } else {
    }
    return
  }
  func.func @transform_0(%arg0: i32) -> (i32, i32) {
    %c0_i32 = arith.constant 0 : i32
    %c0_i32_0 = arith.constant 0 : i32
    return %c0_i32, %arg0 : i32, i32
  }
  func.func @transform_1(%arg0: i32) -> (i32, i32) {
    %c0_i32 = arith.constant 0 : i32
    %c0_i32_0 = arith.constant 0 : i32
    return %arg0, %c0_i32 : i32, i32
  }
  func.func @transform_2(%arg0: i32) -> (i32, i32) {
    %c0_i32 = arith.constant 0 : i32
    %c0_i32_0 = arith.constant 0 : i32
    %c0_i32_1 = arith.constant 0 : i32
    return %c0_i32, %c0_i32_0 : i32, i32
  }
  func.func @transform_3(%arg0: i32) -> (i32, i32) {
    %c0_i32 = arith.constant 0 : i32
    %c0_i32_0 = arith.constant 0 : i32
    %c0_i32_1 = arith.constant 0 : i32
    return %c0_i32, %c0_i32_0 : i32, i32
  }
  func.func @transform_4(%arg0: i32) -> (i32, i32) {
    %c0_i32 = arith.constant 0 : i32
    %c0_i32_0 = arith.constant 0 : i32
    %c0_i32_1 = arith.constant 0 : i32
    return %c0_i32, %c0_i32_0 : i32, i32
  }
  func.func @transform_5(%arg0: i32) -> (i32, i32) {
    %c0_i32 = arith.constant 0 : i32
    %c0_i32_0 = arith.constant 0 : i32
    %c0_i32_1 = arith.constant 0 : i32
    return %c0_i32, %c0_i32_0 : i32, i32
  }
}

</mosaic_0001>

<llo_original>
// kernel: predictor_forward.1
$region0: #{predictor_forward.1}
  #allocation0 [shape = 'u32[]', space=smem, size = 0x4, offset = 0x4, fixed_abs, tag = 'smem constant byte address 0x4 - core index']
  #allocation1 [shape = 'u32[72,128]{1,0:T(1,128)}', space=vmem, size = 0x9000, scoped, tag = 'internal scratch']
  #allocation2 [shape = 'f32[2,64]{1,0:T(2,128)}', space=vmem, size = 0x400, scoped, tag = 'scratch operand']
  #allocation3 [shape = 'f32[1,1]{1,0:T(1,128)S(1)}', space=vmem, size = 0x200, scoped, tag = 'scoped memory for predictor_forward.1']
  %s0 = inlined_call_operand.vmem [shape: bf16[2,6144], index: 0, kind: input, shape index: {}]
  %s1 = inlined_call_operand.vmem [shape: bf16[6144,64], index: 1, kind: input, shape index: {}]
  %s2 = inlined_call_operand.vmem [shape: f32[1,64], index: 2, kind: input, shape index: {}]
  %s3 = inlined_call_operand.vmem [shape: f32[1,64], index: 3, kind: input, shape index: {}]
  %s4 = inlined_call_operand.<no memory space> [shape: f32[1,1], index: 4, kind: input, shape index: {}]
  %s5 = inlined_call_operand.vmem [shape: f32[2,1], index: 5, kind: output, shape index: {}]
  %s6 = sld [smem:[#allocation0]]
  $region61: #{predictor_forward.1} parent=0
    _
  %s8 = ssub.s32 1, %s6
  %s9 = scalar_select 0, %s8, %s6
  %v10 = vstv %s4
  %11 = vst [vmem:[#allocation3] sm:$0x1] %v10
  loop: start=0, step=1, limit=5
  $region2: #{predictor_forward.1} parent=0 // loop_pre_header
    _
  $region3: #{predictor_forward.1} parent=0 // loop_header
    %s13 = sphi 0, %s17
    %p14 = scmp.ge.s32.totalorder %s13, 5
    %s23 = sphi 0, %s25
    %s26 = sphi 0, %s23
    %s27 = sphi 0, %s26
    %s43 = sphi 0, %s27
    %s49 = sphi 0, %s51
    %s52 = sphi 0, %s49
    %s53 = sphi 0, %s52
    %s69 = sphi 0, %s53
    %s73 = sphi 0, %s73
    %s75 = sphi 0, %s73
    %s76 = sphi 0, %s75
    %s90 = sphi 0, %s76
    %s94 = sphi 0, %s94
    %s96 = sphi 0, %s94
    %s97 = sphi 0, %s96
    %s111 = sphi 0, %s97
    %s115 = sphi 0, %s115
    %s117 = sphi 0, %s115
    %s118 = sphi 0, %s117
    %s132 = sphi 0, %s118
    %s136 = sphi 0, %s136
    %s138 = sphi 0, %s136
    %s139 = sphi 0, %s138
    %s153 = sphi 0, %s139
  $region4: #{predictor_forward.1} parent=0 // loop_header_branch
    %16 = sbr.rel (%p14) target = $region8
  $region5: #{predictor_forward.1} parent=0 // loop_body
    %s18 = ssub.s32 %s13, 1
    %s19 = ssub.s32 %s13, 2
    %s20 = sadd.s32 %s13, 1
    %s21 = ssub.s32 %s13, %s20
    %p22 = scmp.eq.s32.totalorder %s21, 0
    %s24 = sadd.s32 %s23, 1
    %s25 = scalar_select %p22, %s23, %s24
    %p28 = pneg %p22
    %p29 = scmp.eq.s32.totalorder %s13, 2
    %p30 = por %p28, %p29
    %p31 = scmp.ne.s32.totalorder %s23, %s26
    %p32 = scmp.eq.s32.totalorder %s13, 0
    %p33 = por %p31, %p32
    %p34 = scmp.ne.s32.totalorder %s23, %s26
    %p35 = scmp.eq.s32.totalorder %s18, 2
    %p36 = por %p34, %p35
    %p37 = scmp.ne.s32.totalorder %s26, %s27
    %p38 = scmp.eq.s32.totalorder %s18, 0
    %p39 = por %p37, %p38
    %p40 = scmp.ne.s32.totalorder %s26, %s27
    %p41 = scmp.eq.s32.totalorder %s19, 2
    %p42 = por %p40, %p41
    %p44 = scmp.ne.s32.totalorder %s27, %s43
    %p45 = scmp.eq.s32.totalorder %s19, 0
    %p46 = por %p44, %p45
    %s47 = ssub.s32 %s13, %s20
    %p48 = scmp.eq.s32.totalorder %s47, 0
    %s50 = sadd.s32 %s49, 1
    %s51 = scalar_select %p48, %s49, %s50
    %p54 = pneg %p48
    %p55 = scmp.eq.s32.totalorder %s13, 2
    %p56 = por %p54, %p55
    %p57 = scmp.ne.s32.totalorder %s49, %s52
    %p58 = scmp.eq.s32.totalorder %s13, 0
    %p59 = por %p57, %p58
    %p60 = scmp.ne.s32.totalorder %s49, %s52
    %p61 = scmp.eq.s32.totalorder %s18, 2
    %p62 = por %p60, %p61
    %p63 = scmp.ne.s32.totalorder %s52, %s53
    %p64 = scmp.eq.s32.totalorder %s18, 0
    %p65 = por %p63, %p64
    %p66 = scmp.ne.s32.totalorder %s52, %s53
    %p67 = scmp.eq.s32.totalorder %s19, 2
    %p68 = por %p66, %p67
    %p70 = scmp.ne.s32.totalorder %s53, %s69
    %p71 = scmp.eq.s32.totalorder %s19, 0
    %p72 = por %p70, %p71
    %s74 = sadd.s32 %s73, 1
    %p77 = scmp.eq.s32.totalorder %s13, 2
    %p78 = scmp.ne.s32.totalorder %s73, %s75
    %p79 = scmp.eq.s32.totalorder %s13, 0
    %p80 = por %p78, %p79
    %p81 = scmp.ne.s32.totalorder %s73, %s75
    %p82 = scmp.eq.s32.totalorder %s18, 2
    %p83 = por %p81, %p82
    %p84 = scmp.ne.s32.totalorder %s75, %s76
    %p85 = scmp.eq.s32.totalorder %s18, 0
    %p86 = por %p84, %p85
    %p87 = scmp.ne.s32.totalorder %s75, %s76
    %p88 = scmp.eq.s32.totalorder %s19, 2
    %p89 = por %p87, %p88
    %p91 = scmp.ne.s32.totalorder %s76, %s90
    %p92 = scmp.eq.s32.totalorder %s19, 0
    %p93 = por %p91, %p92
    %s95 = sadd.s32 %s94, 1
    %p98 = scmp.eq.s32.totalorder %s13, 2
    %p99 = scmp.ne.s32.totalorder %s94, %s96
    %p100 = scmp.eq.s32.totalorder %s13, 0
    %p101 = por %p99, %p100
    %p102 = scmp.ne.s32.totalorder %s94, %s96
    %p103 = scmp.eq.s32.totalorder %s18, 2
    %p104 = por %p102, %p103
    %p105 = scmp.ne.s32.totalorder %s96, %s97
    %p106 = scmp.eq.s32.totalorder %s18, 0
    %p107 = por %p105, %p106
    %p108 = scmp.ne.s32.totalorder %s96, %s97
    %p109 = scmp.eq.s32.totalorder %s19, 2
    %p110 = por %p108, %p109
    %p112 = scmp.ne.s32.totalorder %s97, %s111
    %p113 = scmp.eq.s32.totalorder %s19, 0
    %p114 = por %p112, %p113
    %s116 = sadd.s32 %s115, 1
    %p119 = scmp.eq.s32.totalorder %s13, 2
    %p120 = scmp.ne.s32.totalorder %s115, %s117
    %p121 = scmp.eq.s32.totalorder %s13, 0
    %p122 = por %p120, %p121
    %p123 = scmp.ne.s32.totalorder %s115, %s117
    %p124 = scmp.eq.s32.totalorder %s18, 2
    %p125 = por %p123, %p124
    %p126 = scmp.ne.s32.totalorder %s117, %s118
    %p127 = scmp.eq.s32.totalorder %s18, 0
    %p128 = por %p126, %p127
    %p129 = scmp.ne.s32.totalorder %s117, %s118
    %p130 = scmp.eq.s32.totalorder %s19, 2
    %p131 = por %p129, %p130
    %p133 = scmp.ne.s32.totalorder %s118, %s132
    %p134 = scmp.eq.s32.totalorder %s19, 0
    %p135 = por %p133, %p134
    %s137 = sadd.s32 %s136, 1
    %p140 = scmp.eq.s32.totalorder %s13, 2
    %p141 = scmp.ne.s32.totalorder %s136, %s138
    %p142 = scmp.eq.s32.totalorder %s13, 0
    %p143 = por %p141, %p142
    %p144 = scmp.ne.s32.totalorder %s136, %s138
    %p145 = scmp.eq.s32.totalorder %s18, 2
    %p146 = por %p144, %p145
    %p147 = scmp.ne.s32.totalorder %s138, %s139
    %p148 = scmp.eq.s32.totalorder %s18, 0
    %p149 = por %p147, %p148
    %p150 = scmp.ne.s32.totalorder %s138, %s139
    %p151 = scmp.eq.s32.totalorder %s19, 2
    %p152 = por %p150, %p151
    %p154 = scmp.ne.s32.totalorder %s139, %s153
    %p155 = scmp.eq.s32.totalorder %s19, 0
    %p156 = por %p154, %p155
    %p157 = scmp.le.s32.totalorder 1, %s13
    %p158 = scmp.lt.s32.totalorder %s13, 4
    %p159 = pnand %p157, %p158
    %p160 = pneg %p159
    // Predicated region
    $region9: #{predictor_forward.1} parent=5 // pred_check
      _
    $region10: #{predictor_forward.1} parent=5 // pred_check_branch
      %162 = sbr.rel (%p159) target = $region12
    $region11: #{predictor_forward.1} parent=5 // pred_region
      %s163 = ssub.s32 %s13, 1
      // Predicated region
      $region13: #{predictor_forward.1} parent=11 // pred_check
        %p164 = pneg %p86
      $region14: #{predictor_forward.1} parent=11 // pred_check_branch
        %166 = sbr.rel (%p164) target = $region16
      $region15: #{predictor_forward.1} parent=11 // pred_region
        _
      $region16: #{predictor_forward.1} parent=11 // pred_fallthru
        _
      // Predicated region
      $region17: #{predictor_forward.1} parent=11 // pred_check
        %p167 = pneg %p107
      $region18: #{predictor_forward.1} parent=11 // pred_check_branch
        %169 = sbr.rel (%p167) target = $region20
      $region19: #{predictor_forward.1} parent=11 // pred_region
        _
      $region20: #{predictor_forward.1} parent=11 // pred_fallthru
        _
      // Predicated region
      $region21: #{predictor_forward.1} parent=11 // pred_check
        %p170 = pneg %p128
      $region22: #{predictor_forward.1} parent=11 // pred_check_branch
        %172 = sbr.rel (%p170) target = $region24
      $region23: #{predictor_forward.1} parent=11 // pred_region
        _
      $region24: #{predictor_forward.1} parent=11 // pred_fallthru
        _
    $region12: #{predictor_forward.1} parent=5 // pred_fallthru
      _
    %p173 = scmp.lt.s32.totalorder %s13, 3
    // Predicated region
    $region25: #{predictor_forward.1} parent=5 // pred_check
      %p174 = pneg %p173
    $region26: #{predictor_forward.1} parent=5 // pred_check_branch
      %176 = sbr.rel (%p174) target = $region28
    $region27: #{predictor_forward.1} parent=5 // pred_region
      // Predicated region
      $region29: #{predictor_forward.1} parent=27 // pred_check
        %p177 = pneg %p33
      $region30: #{predictor_forward.1} parent=27 // pred_check_branch
        %179 = sbr.rel (%p177) target = $region32
      $region31: #{predictor_forward.1} parent=27 // pred_region
        %s180 = smul.u32 16, %s13
        %p181 = scmp.lt.s32.totalorder %s180, 47
        %s182 = scalar_select %p181, %s180, 47
        %s183 = scalar_lea.vmem %s0, %s182
        %s184 = smul.u32 16, %s13
      $region32: #{predictor_forward.1} parent=27 // pred_fallthru
        _
      // Predicated region
      $region33: #{predictor_forward.1} parent=27 // pred_check
        %p185 = pneg %p59
      $region34: #{predictor_forward.1} parent=27 // pred_check_branch
        %187 = sbr.rel (%p185) target = $region36
      $region35: #{predictor_forward.1} parent=27 // pred_region
        %s188 = smul.u32 256, %s13
        %p189 = scmp.lt.s32.totalorder %s188, 767
        %s190 = scalar_select %p189, %s188, 767
        %s191 = smul.addr %s190, 4
        %s192 = scalar_lea.vmem %s1, %s191
        %s193 = smul.u32 256, %s13
      $region36: #{predictor_forward.1} parent=27 // pred_fallthru
        _
    $region28: #{predictor_forward.1} parent=5 // pred_fallthru
      _
    %p194 = scmp.le.s32.totalorder 1, %s13
    %p195 = scmp.lt.s32.totalorder %s13, 4
    %p196 = pnand %p194, %p195
    %p197 = pneg %p196
    // Predicated region
    $region37: #{predictor_forward.1} parent=5 // pred_check
      _
    $region38: #{predictor_forward.1} parent=5 // pred_check_branch
      %199 = sbr.rel (%p196) target = $region40
    $region39: #{predictor_forward.1} parent=5 // pred_region
      %s200 = ssub.s32 %s13, 1
      %s201 = smul.u32 16, %s18
      %p202 = scmp.lt.s32.totalorder %s201, 47
      %s203 = scalar_select %p202, %s201, 47
      %s204 = scalar_lea.vmem %s0, %s203
      %p205 = pneg %p39
      %p206 = pneg %p36
      %s207 = smul.u32 256, %s18
      %p208 = scmp.lt.s32.totalorder %s207, 767
      %s209 = scalar_select %p208, %s207, 767
      %s210 = smul.addr %s209, 4
      %s211 = scalar_lea.vmem %s1, %s210
      %p212 = pneg %p65
      %p213 = pneg %p62
      %p214 = pneg %p86
      %p215 = pneg %p83
      %p216 = pneg %p107
      %p217 = pneg %p104
      %p218 = pneg %p128
      %p219 = pneg %p125
      %p220 = pneg %p149
      %p221 = pneg %p146
      %s222 = smul.u32 16, %s18
      %p223 = scmp.lt.s32.totalorder %s222, 47
      %s224 = scalar_select %p223, %s222, 47
      %s225 = scalar_lea.vmem %s0, %s224
      %s226 = smul.u32 16, %s18
      %s227 = smul.u32 256, %s18
      %p228 = scmp.lt.s32.totalorder %s227, 767
      %s229 = scalar_select %p228, %s227, 767
      %s230 = smul.addr %s229, 4
      %s231 = scalar_lea.vmem %s1, %s230
      %s232 = smul.u32 256, %s18
      %p233 = scmp.eq.s32.totalorder %s18, 0
      // Predicated region
      $region41: #{predictor_forward.1} parent=39 // pred_check
        %p234 = pneg %p233
      $region42: #{predictor_forward.1} parent=39 // pred_check_branch
        %236 = sbr.rel (%p234) target = $region44
      $region43: #{predictor_forward.1} parent=39 // pred_region
        %vm237 = vcmask 517120
        %238 = vst.msk [vmem:[#allocation2] sm:$0x3] %vm237, 0.0
      $region44: #{predictor_forward.1} parent=39 // pred_fallthru
        _
      %v239 = vld [vmem:[#allocation2] sm:$0x3]
      %v240 = vld [vmem:[%s225] sm:$0xff]
      %v241 = vld [vmem:[%s225 + $0x8] sm:$0xff]
      %v242 = vld [vmem:[%s231] sm:$0xf]
      %v243 = vld [vmem:[%s231 + $0x4] sm:$0xf]
      %v244 = vld [vmem:[%s231 + $0x8] sm:$0xf]
      %v245 = vld [vmem:[%s231 + $0xc] sm:$0xf]
      %v246 = vld [vmem:[%s231 + $0x10] sm:$0xf]
      %v247 = vld [vmem:[%s231 + $0x14] sm:$0xf]
      %v248 = vld [vmem:[%s231 + $0x18] sm:$0xf]
      %v249 = vld [vmem:[%s231 + $0x1c] sm:$0xf]
      %v250 = vld [vmem:[%s231 + $0x20] sm:$0xf]
      %v251 = vld [vmem:[%s231 + $0x24] sm:$0xf]
      %v252 = vld [vmem:[%s231 + $0x28] sm:$0xf]
      %v253 = vld [vmem:[%s231 + $0x2c] sm:$0xf]
      %v254 = vld [vmem:[%s231 + $0x30] sm:$0xf]
      %v255 = vld [vmem:[%s231 + $0x34] sm:$0xf]
      %v256 = vld [vmem:[%s231 + $0x38] sm:$0xf]
      %v257 = vld [vmem:[%s231 + $0x3c] sm:$0xf]
      %v258 = vld [vmem:[%s231 + $0x40] sm:$0xf]
      %v259 = vld [vmem:[%s231 + $0x44] sm:$0xf]
      %v260 = vld [vmem:[%s231 + $0x48] sm:$0xf]
      %v261 = vld [vmem:[%s231 + $0x4c] sm:$0xf]
      %v262 = vld [vmem:[%s231 + $0x50] sm:$0xf]
      %v263 = vld [vmem:[%s231 + $0x54] sm:$0xf]
      %v264 = vld [vmem:[%s231 + $0x58] sm:$0xf]
      %v265 = vld [vmem:[%s231 + $0x5c] sm:$0xf]
      %v266 = vld [vmem:[%s231 + $0x60] sm:$0xf]
      %v267 = vld [vmem:[%s231 + $0x64] sm:$0xf]
      %v268 = vld [vmem:[%s231 + $0x68] sm:$0xf]
      %v269 = vld [vmem:[%s231 + $0x6c] sm:$0xf]
      %v270 = vld [vmem:[%s231 + $0x70] sm:$0xf]
      %v271 = vld [vmem:[%s231 + $0x74] sm:$0xf]
      %v272 = vld [vmem:[%s231 + $0x78] sm:$0xf]
      %v273 = vld [vmem:[%s231 + $0x7c] sm:$0xf]
      %v274 = vld [vmem:[%s231 + $0x80] sm:$0xf]
      %v275 = vld [vmem:[%s231 + $0x84] sm:$0xf]
      %v276 = vld [vmem:[%s231 + $0x88] sm:$0xf]
      %v277 = vld [vmem:[%s231 + $0x8c] sm:$0xf]
      %v278 = vld [vmem:[%s231 + $0x90] sm:$0xf]
      %v279 = vld [vmem:[%s231 + $0x94] sm:$0xf]
      %v280 = vld [vmem:[%s231 + $0x98] sm:$0xf]
      %v281 = vld [vmem:[%s231 + $0x9c] sm:$0xf]
      %v282 = vld [vmem:[%s231 + $0xa0] sm:$0xf]
      %v283 = vld [vmem:[%s231 + $0xa4] sm:$0xf]
      %v284 = vld [vmem:[%s231 + $0xa8] sm:$0xf]
      %v285 = vld [vmem:[%s231 + $0xac] sm:$0xf]
      %v286 = vld [vmem:[%s231 + $0xb0] sm:$0xf]
      %v287 = vld [vmem:[%s231 + $0xb4] sm:$0xf]
      %v288 = vld [vmem:[%s231 + $0xb8] sm:$0xf]
      %v289 = vld [vmem:[%s231 + $0xbc] sm:$0xf]
      %v290 = vld [vmem:[%s231 + $0xc0] sm:$0xf]
      %v291 = vld [vmem:[%s231 + $0xc4] sm:$0xf]
      %v292 = vld [vmem:[%s231 + $0xc8] sm:$0xf]
      %v293 = vld [vmem:[%s231 + $0xcc] sm:$0xf]
      %v294 = vld [vmem:[%s231 + $0xd0] sm:$0xf]
      %v295 = vld [vmem:[%s231 + $0xd4] sm:$0xf]
      %v296 = vld [vmem:[%s231 + $0xd8] sm:$0xf]
      %v297 = vld [vmem:[%s231 + $0xdc] sm:$0xf]
      %v298 = vld [vmem:[%s231 + $0xe0] sm:$0xf]
      %v299 = vld [vmem:[%s231 + $0xe4] sm:$0xf]
      %v300 = vld [vmem:[%s231 + $0xe8] sm:$0xf]
      %v301 = vld [vmem:[%s231 + $0xec] sm:$0xf]
      %v302 = vld [vmem:[%s231 + $0xf0] sm:$0xf]
      %v303 = vld [vmem:[%s231 + $0xf4] sm:$0xf]
      %v304 = vld [vmem:[%s231 + $0xf8] sm:$0xf]
      %v305 = vld [vmem:[%s231 + $0xfc] sm:$0xf]
      %v306 = vld [vmem:[%s231 + $0x100] sm:$0xf]
      %v307 = vld [vmem:[%s231 + $0x104] sm:$0xf]
      %v308 = vld [vmem:[%s231 + $0x108] sm:$0xf]
      %v309 = vld [vmem:[%s231 + $0x10c] sm:$0xf]
      %v310 = vld [vmem:[%s231 + $0x110] sm:$0xf]
      %v311 = vld [vmem:[%s231 + $0x114] sm:$0xf]
      %v312 = vld [vmem:[%s231 + $0x118] sm:$0xf]
      %v313 = vld [vmem:[%s231 + $0x11c] sm:$0xf]
      %v314 = vld [vmem:[%s231 + $0x120] sm:$0xf]
      %v315 = vld [vmem:[%s231 + $0x124] sm:$0xf]
      %v316 = vld [vmem:[%s231 + $0x128] sm:$0xf]
      %v317 = vld [vmem:[%s231 + $0x12c] sm:$0xf]
      %v318 = vld [vmem:[%s231 + $0x130] sm:$0xf]
      %v319 = vld [vmem:[%s231 + $0x134] sm:$0xf]
      %v320 = vld [vmem:[%s231 + $0x138] sm:$0xf]
      %v321 = vld [vmem:[%s231 + $0x13c] sm:$0xf]
      %v322 = vld [vmem:[%s231 + $0x140] sm:$0xf]
      %v323 = vld [vmem:[%s231 + $0x144] sm:$0xf]
      %v324 = vld [vmem:[%s231 + $0x148] sm:$0xf]
      %v325 = vld [vmem:[%s231 + $0x14c] sm:$0xf]
      %v326 = vld [vmem:[%s231 + $0x150] sm:$0xf]
      %v327 = vld [vmem:[%s231 + $0x154] sm:$0xf]
      %v328 = vld [vmem:[%s231 + $0x158] sm:$0xf]
      %v329 = vld [vmem:[%s231 + $0x15c] sm:$0xf]
      %v330 = vld [vmem:[%s231 + $0x160] sm:$0xf]
      %v331 = vld [vmem:[%s231 + $0x164] sm:$0xf]
      %v332 = vld [vmem:[%s231 + $0x168] sm:$0xf]
      %v333 = vld [vmem:[%s231 + $0x16c] sm:$0xf]
      %v334 = vld [vmem:[%s231 + $0x170] sm:$0xf]
      %v335 = vld [vmem:[%s231 + $0x174] sm:$0xf]
      %v336 = vld [vmem:[%s231 + $0x178] sm:$0xf]
      %v337 = vld [vmem:[%s231 + $0x17c] sm:$0xf]
      %v338 = vld [vmem:[%s231 + $0x180] sm:$0xf]
      %v339 = vld [vmem:[%s231 + $0x184] sm:$0xf]
      %v340 = vld [vmem:[%s231 + $0x188] sm:$0xf]
      %v341 = vld [vmem:[%s231 + $0x18c] sm:$0xf]
      %v342 = vld [vmem:[%s231 + $0x190] sm:$0xf]
      %v343 = vld [vmem:[%s231 + $0x194] sm:$0xf]
      %v344 = vld [vmem:[%s231 + $0x198] sm:$0xf]
      %v345 = vld [vmem:[%s231 + $0x19c] sm:$0xf]
      %v346 = vld [vmem:[%s231 + $0x1a0] sm:$0xf]
      %v347 = vld [vmem:[%s231 + $0x1a4] sm:$0xf]
      %v348 = vld [vmem:[%s231 + $0x1a8] sm:$0xf]
      %v349 = vld [vmem:[%s231 + $0x1ac] sm:$0xf]
      %v350 = vld [vmem:[%s231 + $0x1b0] sm:$0xf]
      %v351 = vld [vmem:[%s231 + $0x1b4] sm:$0xf]
      %v352 = vld [vmem:[%s231 + $0x1b8] sm:$0xf]
      %v353 = vld [vmem:[%s231 + $0x1bc] sm:$0xf]
      %v354 = vld [vmem:[%s231 + $0x1c0] sm:$0xf]
      %v355 = vld [vmem:[%s231 + $0x1c4] sm:$0xf]
      %v356 = vld [vmem:[%s231 + $0x1c8] sm:$0xf]
      %v357 = vld [vmem:[%s231 + $0x1cc] sm:$0xf]
      %v358 = vld [vmem:[%s231 + $0x1d0] sm:$0xf]
      %v359 = vld [vmem:[%s231 + $0x1d4] sm:$0xf]
      %v360 = vld [vmem:[%s231 + $0x1d8] sm:$0xf]
      %v361 = vld [vmem:[%s231 + $0x1dc] sm:$0xf]
      %v362 = vld [vmem:[%s231 + $0x1e0] sm:$0xf]
      %v363 = vld [vmem:[%s231 + $0x1e4] sm:$0xf]
      %v364 = vld [vmem:[%s231 + $0x1e8] sm:$0xf]
      %v365 = vld [vmem:[%s231 + $0x1ec] sm:$0xf]
      %v366 = vld [vmem:[%s231 + $0x1f0] sm:$0xf]
      %v367 = vld [vmem:[%s231 + $0x1f4] sm:$0xf]
      %v368 = vld [vmem:[%s231 + $0x1f8] sm:$0xf]
      %v369 = vld [vmem:[%s231 + $0x1fc] sm:$0xf]
      %v370 = vld [vmem:[%s231 + $0x200] sm:$0xf]
      %v371 = vld [vmem:[%s231 + $0x204] sm:$0xf]
      %v372 = vld [vmem:[%s231 + $0x208] sm:$0xf]
      %v373 = vld [vmem:[%s231 + $0x20c] sm:$0xf]
      %v374 = vld [vmem:[%s231 + $0x210] sm:$0xf]
      %v375 = vld [vmem:[%s231 + $0x214] sm:$0xf]
      %v376 = vld [vmem:[%s231 + $0x218] sm:$0xf]
      %v377 = vld [vmem:[%s231 + $0x21c] sm:$0xf]
      %v378 = vld [vmem:[%s231 + $0x220] sm:$0xf]
      %v379 = vld [vmem:[%s231 + $0x224] sm:$0xf]
      %v380 = vld [vmem:[%s231 + $0x228] sm:$0xf]
      %v381 = vld [vmem:[%s231 + $0x22c] sm:$0xf]
      %v382 = vld [vmem:[%s231 + $0x230] sm:$0xf]
      %v383 = vld [vmem:[%s231 + $0x234] sm:$0xf]
      %v384 = vld [vmem:[%s231 + $0x238] sm:$0xf]
      %v385 = vld [vmem:[%s231 + $0x23c] sm:$0xf]
      %v386 = vld [vmem:[%s231 + $0x240] sm:$0xf]
      %v387 = vld [vmem:[%s231 + $0x244] sm:$0xf]
      %v388 = vld [vmem:[%s231 + $0x248] sm:$0xf]
      %v389 = vld [vmem:[%s231 + $0x24c] sm:$0xf]
      %v390 = vld [vmem:[%s231 + $0x250] sm:$0xf]
      %v391 = vld [vmem:[%s231 + $0x254] sm:$0xf]
      %v392 = vld [vmem:[%s231 + $0x258] sm:$0xf]
      %v393 = vld [vmem:[%s231 + $0x25c] sm:$0xf]
      %v394 = vld [vmem:[%s231 + $0x260] sm:$0xf]
      %v395 = vld [vmem:[%s231 + $0x264] sm:$0xf]
      %v396 = vld [vmem:[%s231 + $0x268] sm:$0xf]
      %v397 = vld [vmem:[%s231 + $0x26c] sm:$0xf]
      %v398 = vld [vmem:[%s231 + $0x270] sm:$0xf]
      %v399 = vld [vmem:[%s231 + $0x274] sm:$0xf]
      %v400 = vld [vmem:[%s231 + $0x278] sm:$0xf]
      %v401 = vld [vmem:[%s231 + $0x27c] sm:$0xf]
      %v402 = vld [vmem:[%s231 + $0x280] sm:$0xf]
      %v403 = vld [vmem:[%s231 + $0x284] sm:$0xf]
      %v404 = vld [vmem:[%s231 + $0x288] sm:$0xf]
      %v405 = vld [vmem:[%s231 + $0x28c] sm:$0xf]
      %v406 = vld [vmem:[%s231 + $0x290] sm:$0xf]
      %v407 = vld [vmem:[%s231 + $0x294] sm:$0xf]
      %v408 = vld [vmem:[%s231 + $0x298] sm:$0xf]
      %v409 = vld [vmem:[%s231 + $0x29c] sm:$0xf]
      %v410 = vld [vmem:[%s231 + $0x2a0] sm:$0xf]
      %v411 = vld [vmem:[%s231 + $0x2a4] sm:$0xf]
      %v412 = vld [vmem:[%s231 + $0x2a8] sm:$0xf]
      %v413 = vld [vmem:[%s231 + $0x2ac] sm:$0xf]
      %v414 = vld [vmem:[%s231 + $0x2b0] sm:$0xf]
      %v415 = vld [vmem:[%s231 + $0x2b4] sm:$0xf]
      %v416 = vld [vmem:[%s231 + $0x2b8] sm:$0xf]
      %v417 = vld [vmem:[%s231 + $0x2bc] sm:$0xf]
      %v418 = vld [vmem:[%s231 + $0x2c0] sm:$0xf]
      %v419 = vld [vmem:[%s231 + $0x2c4] sm:$0xf]
      %v420 = vld [vmem:[%s231 + $0x2c8] sm:$0xf]
      %v421 = vld [vmem:[%s231 + $0x2cc] sm:$0xf]
      %v422 = vld [vmem:[%s231 + $0x2d0] sm:$0xf]
      %v423 = vld [vmem:[%s231 + $0x2d4] sm:$0xf]
      %v424 = vld [vmem:[%s231 + $0x2d8] sm:$0xf]
      %v425 = vld [vmem:[%s231 + $0x2dc] sm:$0xf]
      %v426 = vld [vmem:[%s231 + $0x2e0] sm:$0xf]
      %v427 = vld [vmem:[%s231 + $0x2e4] sm:$0xf]
      %v428 = vld [vmem:[%s231 + $0x2e8] sm:$0xf]
      %v429 = vld [vmem:[%s231 + $0x2ec] sm:$0xf]
      %v430 = vld [vmem:[%s231 + $0x2f0] sm:$0xf]
      %v431 = vld [vmem:[%s231 + $0x2f4] sm:$0xf]
      %v432 = vld [vmem:[%s231 + $0x2f8] sm:$0xf]
      %v433 = vld [vmem:[%s231 + $0x2fc] sm:$0xf]
      %v434 = vld [vmem:[%s231 + $0x300] sm:$0xf]
      %v435 = vld [vmem:[%s231 + $0x304] sm:$0xf]
      %v436 = vld [vmem:[%s231 + $0x308] sm:$0xf]
      %v437 = vld [vmem:[%s231 + $0x30c] sm:$0xf]
      %v438 = vld [vmem:[%s231 + $0x310] sm:$0xf]
      %v439 = vld [vmem:[%s231 + $0x314] sm:$0xf]
      %v440 = vld [vmem:[%s231 + $0x318] sm:$0xf]
      %v441 = vld [vmem:[%s231 + $0x31c] sm:$0xf]
      %v442 = vld [vmem:[%s231 + $0x320] sm:$0xf]
      %v443 = vld [vmem:[%s231 + $0x324] sm:$0xf]
      %v444 = vld [vmem:[%s231 + $0x328] sm:$0xf]
      %v445 = vld [vmem:[%s231 + $0x32c] sm:$0xf]
      %v446 = vld [vmem:[%s231 + $0x330] sm:$0xf]
      %v447 = vld [vmem:[%s231 + $0x334] sm:$0xf]
      %v448 = vld [vmem:[%s231 + $0x338] sm:$0xf]
      %v449 = vld [vmem:[%s231 + $0x33c] sm:$0xf]
      %v450 = vld [vmem:[%s231 + $0x340] sm:$0xf]
      %v451 = vld [vmem:[%s231 + $0x344] sm:$0xf]
      %v452 = vld [vmem:[%s231 + $0x348] sm:$0xf]
      %v453 = vld [vmem:[%s231 + $0x34c] sm:$0xf]
      %v454 = vld [vmem:[%s231 + $0x350] sm:$0xf]
      %v455 = vld [vmem:[%s231 + $0x354] sm:$0xf]
      %v456 = vld [vmem:[%s231 + $0x358] sm:$0xf]
      %v457 = vld [vmem:[%s231 + $0x35c] sm:$0xf]
      %v458 = vld [vmem:[%s231 + $0x360] sm:$0xf]
      %v459 = vld [vmem:[%s231 + $0x364] sm:$0xf]
      %v460 = vld [vmem:[%s231 + $0x368] sm:$0xf]
      %v461 = vld [vmem:[%s231 + $0x36c] sm:$0xf]
      %v462 = vld [vmem:[%s231 + $0x370] sm:$0xf]
      %v463 = vld [vmem:[%s231 + $0x374] sm:$0xf]
      %v464 = vld [vmem:[%s231 + $0x378] sm:$0xf]
      %v465 = vld [vmem:[%s231 + $0x37c] sm:$0xf]
      %v466 = vld [vmem:[%s231 + $0x380] sm:$0xf]
      %v467 = vld [vmem:[%s231 + $0x384] sm:$0xf]
      %v468 = vld [vmem:[%s231 + $0x388] sm:$0xf]
      %v469 = vld [vmem:[%s231 + $0x38c] sm:$0xf]
      %v470 = vld [vmem:[%s231 + $0x390] sm:$0xf]
      %v471 = vld [vmem:[%s231 + $0x394] sm:$0xf]
      %v472 = vld [vmem:[%s231 + $0x398] sm:$0xf]
      %v473 = vld [vmem:[%s231 + $0x39c] sm:$0xf]
      %v474 = vld [vmem:[%s231 + $0x3a0] sm:$0xf]
      %v475 = vld [vmem:[%s231 + $0x3a4] sm:$0xf]
      %v476 = vld [vmem:[%s231 + $0x3a8] sm:$0xf]
      %v477 = vld [vmem:[%s231 + $0x3ac] sm:$0xf]
      %v478 = vld [vmem:[%s231 + $0x3b0] sm:$0xf]
      %v479 = vld [vmem:[%s231 + $0x3b4] sm:$0xf]
      %v480 = vld [vmem:[%s231 + $0x3b8] sm:$0xf]
      %v481 = vld [vmem:[%s231 + $0x3bc] sm:$0xf]
      %v482 = vld [vmem:[%s231 + $0x3c0] sm:$0xf]
      %v483 = vld [vmem:[%s231 + $0x3c4] sm:$0xf]
      %v484 = vld [vmem:[%s231 + $0x3c8] sm:$0xf]
      %v485 = vld [vmem:[%s231 + $0x3cc] sm:$0xf]
      %v486 = vld [vmem:[%s231 + $0x3d0] sm:$0xf]
      %v487 = vld [vmem:[%s231 + $0x3d4] sm:$0xf]
      %v488 = vld [vmem:[%s231 + $0x3d8] sm:$0xf]
      %v489 = vld [vmem:[%s231 + $0x3dc] sm:$0xf]
      %v490 = vld [vmem:[%s231 + $0x3e0] sm:$0xf]
      %v491 = vld [vmem:[%s231 + $0x3e4] sm:$0xf]
      %v492 = vld [vmem:[%s231 + $0x3e8] sm:$0xf]
      %v493 = vld [vmem:[%s231 + $0x3ec] sm:$0xf]
      %v494 = vld [vmem:[%s231 + $0x3f0] sm:$0xf]
      %v495 = vld [vmem:[%s231 + $0x3f4] sm:$0xf]
      %v496 = vld [vmem:[%s231 + $0x3f8] sm:$0xf]
      %v497 = vld [vmem:[%s231 + $0x3fc] sm:$0xf]
      %499 = vst [vmem:[#allocation1] ss:$9 sm:$0xff] %v240
      %v500 = vld [vmem:[#allocation1] sm:$0xff]
      %v501 = vld [vmem:[#allocation1 + $0x9] sm:$0xff]
      %v502 = vld [vmem:[#allocation1 + $0x12] sm:$0xff]
      %v503 = vld [vmem:[#allocation1 + $0x1b] sm:$0xff]
      %v504 = vld [vmem:[#allocation1 + $0x24] sm:$0xff]
      %v505 = vld [vmem:[#allocation1 + $0x2d] sm:$0xff]
      %v506 = vld [vmem:[#allocation1 + $0x36] sm:$0xff]
      %v507 = vld [vmem:[#allocation1 + $0x3f] sm:$0xff]
      %509 = vst [vmem:[#allocation1] ss:$9 sm:$0xff] %v241
      %v510 = vld [vmem:[#allocation1] sm:$0xff]
      %v511 = vld [vmem:[#allocation1 + $0x9] sm:$0xff]
      %v512 = vld [vmem:[#allocation1 + $0x12] sm:$0xff]
      %v513 = vld [vmem:[#allocation1 + $0x1b] sm:$0xff]
      %v514 = vld [vmem:[#allocation1 + $0x24] sm:$0xff]
      %v515 = vld [vmem:[#allocation1 + $0x2d] sm:$0xff]
      %v516 = vld [vmem:[#allocation1 + $0x36] sm:$0xff]
      %v517 = vld [vmem:[#allocation1 + $0x3f] sm:$0xff]
      %v790 = vunpack.c.l.b16 %v242
      %v791 = vunpack.c.l.b16 %v243
      %v792 = vunpack.c.l.b16 %v244
      %v793 = vunpack.c.l.b16 %v245
      %v794 = vunpack.c.l.b16 %v246
      %v795 = vunpack.c.l.b16 %v247
      %v796 = vunpack.c.l.b16 %v248
      %v797 = vunpack.c.l.b16 %v249
      %v798 = vunpack.c.l.b16 %v250
      %v799 = vunpack.c.l.b16 %v251
      %v800 = vunpack.c.l.b16 %v252
      %v801 = vunpack.c.l.b16 %v253
      %v802 = vunpack.c.l.b16 %v254
      %v803 = vunpack.c.l.b16 %v255
      %v804 = vunpack.c.l.b16 %v256
      %v805 = vunpack.c.l.b16 %v257
      %v806 = vunpack.c.l.b16 %v258
      %v807 = vunpack.c.l.b16 %v259
      %v808 = vunpack.c.l.b16 %v260
      %v809 = vunpack.c.l.b16 %v261
      %v810 = vunpack.c.l.b16 %v262
      %v811 = vunpack.c.l.b16 %v263
      %v812 = vunpack.c.l.b16 %v264
      %v813 = vunpack.c.l.b16 %v265
      %v814 = vunpack.c.l.b16 %v266
      %v815 = vunpack.c.l.b16 %v267
      %v816 = vunpack.c.l.b16 %v268
      %v817 = vunpack.c.l.b16 %v269
      %v818 = vunpack.c.l.b16 %v270
      %v819 = vunpack.c.l.b16 %v271
      %v820 = vunpack.c.l.b16 %v272
      %v821 = vunpack.c.l.b16 %v273
      %v822 = vunpack.c.l.b16 %v274
      %v823 = vunpack.c.l.b16 %v275
      %v824 = vunpack.c.l.b16 %v276
      %v825 = vunpack.c.l.b16 %v277
      %v826 = vunpack.c.l.b16 %v278
      %v827 = vunpack.c.l.b16 %v279
      %v828 = vunpack.c.l.b16 %v280
      %v829 = vunpack.c.l.b16 %v281
      %v830 = vunpack.c.l.b16 %v282
      %v831 = vunpack.c.l.b16 %v283
      %v832 = vunpack.c.l.b16 %v284
      %v833 = vunpack.c.l.b16 %v285
      %v834 = vunpack.c.l.b16 %v286
      %v835 = vunpack.c.l.b16 %v287
      %v836 = vunpack.c.l.b16 %v288
      %v837 = vunpack.c.l.b16 %v289
      %v838 = vunpack.c.l.b16 %v290
      %v839 = vunpack.c.l.b16 %v291
      %v840 = vunpack.c.l.b16 %v292
      %v841 = vunpack.c.l.b16 %v293
      %v842 = vunpack.c.l.b16 %v294
      %v843 = vunpack.c.l.b16 %v295
      %v844 = vunpack.c.l.b16 %v296
      %v845 = vunpack.c.l.b16 %v297
      %v846 = vunpack.c.l.b16 %v298
      %v847 = vunpack.c.l.b16 %v299
      %v848 = vunpack.c.l.b16 %v300
      %v849 = vunpack.c.l.b16 %v301
      %v850 = vunpack.c.l.b16 %v302
      %v851 = vunpack.c.l.b16 %v303
      %v852 = vunpack.c.l.b16 %v304
      %v853 = vunpack.c.l.b16 %v305
      %v854 = vunpack.c.l.b16 %v306
      %v855 = vunpack.c.l.b16 %v307
      %v856 = vunpack.c.l.b16 %v308
      %v857 = vunpack.c.l.b16 %v309
      %v858 = vunpack.c.l.b16 %v310
      %v859 = vunpack.c.l.b16 %v311
      %v860 = vunpack.c.l.b16 %v312
      %v861 = vunpack.c.l.b16 %v313
      %v862 = vunpack.c.l.b16 %v314
      %v863 = vunpack.c.l.b16 %v315
      %v864 = vunpack.c.l.b16 %v316
      %v865 = vunpack.c.l.b16 %v317
      %v866 = vunpack.c.l.b16 %v318
      %v867 = vunpack.c.l.b16 %v319
      %v868 = vunpack.c.l.b16 %v320
      %v869 = vunpack.c.l.b16 %v321
      %v870 = vunpack.c.l.b16 %v322
      %v871 = vunpack.c.l.b16 %v323
      %v872 = vunpack.c.l.b16 %v324
      %v873 = vunpack.c.l.b16 %v325
      %v874 = vunpack.c.l.b16 %v326
      %v875 = vunpack.c.l.b16 %v327
      %v876 = vunpack.c.l.b16 %v328
      %v877 = vunpack.c.l.b16 %v329
      %v878 = vunpack.c.l.b16 %v330
      %v879 = vunpack.c.l.b16 %v331
      %v880 = vunpack.c.l.b16 %v332
      %v881 = vunpack.c.l.b16 %v333
      %v882 = vunpack.c.l.b16 %v334
      %v883 = vunpack.c.l.b16 %v335
      %v884 = vunpack.c.l.b16 %v336
      %v885 = vunpack.c.l.b16 %v337
      %v886 = vunpack.c.l.b16 %v338
      %v887 = vunpack.c.l.b16 %v339
      %v888 = vunpack.c.l.b16 %v340
      %v889 = vunpack.c.l.b16 %v341
      %v890 = vunpack.c.l.b16 %v342
      %v891 = vunpack.c.l.b16 %v343
      %v892 = vunpack.c.l.b16 %v344
      %v893 = vunpack.c.l.b16 %v345
      %v894 = vunpack.c.l.b16 %v346
      %v895 = vunpack.c.l.b16 %v347
      %v896 = vunpack.c.l.b16 %v348
      %v897 = vunpack.c.l.b16 %v349
      %v898 = vunpack.c.l.b16 %v350
      %v899 = vunpack.c.l.b16 %v351
      %v900 = vunpack.c.l.b16 %v352
      %v901 = vunpack.c.l.b16 %v353
      %v902 = vunpack.c.l.b16 %v354
      %v903 = vunpack.c.l.b16 %v355
      %v904 = vunpack.c.l.b16 %v356
      %v905 = vunpack.c.l.b16 %v357
      %v906 = vunpack.c.l.b16 %v358
      %v907 = vunpack.c.l.b16 %v359
      %v908 = vunpack.c.l.b16 %v360
      %v909 = vunpack.c.l.b16 %v361
      %v910 = vunpack.c.l.b16 %v362
      %v911 = vunpack.c.l.b16 %v363
      %v912 = vunpack.c.l.b16 %v364
      %v913 = vunpack.c.l.b16 %v365
      %v914 = vunpack.c.l.b16 %v366
      %v915 = vunpack.c.l.b16 %v367
      %v916 = vunpack.c.l.b16 %v368
      %v917 = vunpack.c.l.b16 %v369
      %v918 = vunpack.c.l.b16 %v370
      %v919 = vunpack.c.l.b16 %v371
      %v920 = vunpack.c.l.b16 %v372
      %v921 = vunpack.c.l.b16 %v373
      %v922 = vunpack.c.l.b16 %v374
      %v923 = vunpack.c.l.b16 %v375
      %v924 = vunpack.c.l.b16 %v376
      %v925 = vunpack.c.l.b16 %v377
      %v926 = vunpack.c.l.b16 %v378
      %v927 = vunpack.c.l.b16 %v379
      %v928 = vunpack.c.l.b16 %v380
      %v929 = vunpack.c.l.b16 %v381
      %v930 = vunpack.c.l.b16 %v382
      %v931 = vunpack.c.l.b16 %v383
      %v932 = vunpack.c.l.b16 %v384
      %v933 = vunpack.c.l.b16 %v385
      %v934 = vunpack.c.l.b16 %v386
      %v935 = vunpack.c.l.b16 %v387
      %v936 = vunpack.c.l.b16 %v388
      %v937 = vunpack.c.l.b16 %v389
      %v938 = vunpack.c.l.b16 %v390
      %v939 = vunpack.c.l.b16 %v391
      %v940 = vunpack.c.l.b16 %v392
      %v941 = vunpack.c.l.b16 %v393
      %v942 = vunpack.c.l.b16 %v394
      %v943 = vunpack.c.l.b16 %v395
      %v944 = vunpack.c.l.b16 %v396
      %v945 = vunpack.c.l.b16 %v397
      %v946 = vunpack.c.l.b16 %v398
      %v947 = vunpack.c.l.b16 %v399
      %v948 = vunpack.c.l.b16 %v400
      %v949 = vunpack.c.l.b16 %v401
      %v950 = vunpack.c.l.b16 %v402
      %v951 = vunpack.c.l.b16 %v403
      %v952 = vunpack.c.l.b16 %v404
      %v953 = vunpack.c.l.b16 %v405
      %v954 = vunpack.c.l.b16 %v406
      %v955 = vunpack.c.l.b16 %v407
      %v956 = vunpack.c.l.b16 %v408
      %v957 = vunpack.c.l.b16 %v409
      %v958 = vunpack.c.l.b16 %v410
      %v959 = vunpack.c.l.b16 %v411
      %v960 = vunpack.c.l.b16 %v412
      %v961 = vunpack.c.l.b16 %v413
      %v962 = vunpack.c.l.b16 %v414
      %v963 = vunpack.c.l.b16 %v415
      %v964 = vunpack.c.l.b16 %v416
      %v965 = vunpack.c.l.b16 %v417
      %v966 = vunpack.c.l.b16 %v418
      %v967 = vunpack.c.l.b16 %v419
      %v968 = vunpack.c.l.b16 %v420
      %v969 = vunpack.c.l.b16 %v421
      %v970 = vunpack.c.l.b16 %v422
      %v971 = vunpack.c.l.b16 %v423
      %v972 = vunpack.c.l.b16 %v424
      %v973 = vunpack.c.l.b16 %v425
      %v974 = vunpack.c.l.b16 %v426
      %v975 = vunpack.c.l.b16 %v427
      %v976 = vunpack.c.l.b16 %v428
      %v977 = vunpack.c.l.b16 %v429
      %v978 = vunpack.c.l.b16 %v430
      %v979 = vunpack.c.l.b16 %v431
      %v980 = vunpack.c.l.b16 %v432
      %v981 = vunpack.c.l.b16 %v433
      %v982 = vunpack.c.l.b16 %v434
      %v983 = vunpack.c.l.b16 %v435
      %v984 = vunpack.c.l.b16 %v436
      %v985 = vunpack.c.l.b16 %v437
      %v986 = vunpack.c.l.b16 %v438
      %v987 = vunpack.c.l.b16 %v439
      %v988 = vunpack.c.l.b16 %v440
      %v989 = vunpack.c.l.b16 %v441
      %v990 = vunpack.c.l.b16 %v442
      %v991 = vunpack.c.l.b16 %v443
      %v992 = vunpack.c.l.b16 %v444
      %v993 = vunpack.c.l.b16 %v445
      %v994 = vunpack.c.l.b16 %v446
      %v995 = vunpack.c.l.b16 %v447
      %v996 = vunpack.c.l.b16 %v448
      %v997 = vunpack.c.l.b16 %v449
      %v998 = vunpack.c.l.b16 %v450
      %v999 = vunpack.c.l.b16 %v451
      %v1000 = vunpack.c.l.b16 %v452
      %v1001 = vunpack.c.l.b16 %v453
      %v1002 = vunpack.c.l.b16 %v454
      %v1003 = vunpack.c.l.b16 %v455
      %v1004 = vunpack.c.l.b16 %v456
      %v1005 = vunpack.c.l.b16 %v457
      %v1006 = vunpack.c.l.b16 %v458
      %v1007 = vunpack.c.l.b16 %v459
      %v1008 = vunpack.c.l.b16 %v460
      %v1009 = vunpack.c.l.b16 %v461
      %v1010 = vunpack.c.l.b16 %v462
      %v1011 = vunpack.c.l.b16 %v463
      %v1012 = vunpack.c.l.b16 %v464
      %v1013 = vunpack.c.l.b16 %v465
      %v1014 = vunpack.c.l.b16 %v466
      %v1015 = vunpack.c.l.b16 %v467
      %v1016 = vunpack.c.l.b16 %v468
      %v1017 = vunpack.c.l.b16 %v469
      %v1018 = vunpack.c.l.b16 %v470
      %v1019 = vunpack.c.l.b16 %v471
      %v1020 = vunpack.c.l.b16 %v472
      %v1021 = vunpack.c.l.b16 %v473
      %v1022 = vunpack.c.l.b16 %v474
      %v1023 = vunpack.c.l.b16 %v475
      %v1024 = vunpack.c.l.b16 %v476
      %v1025 = vunpack.c.l.b16 %v477
      %v1026 = vunpack.c.l.b16 %v478
      %v1027 = vunpack.c.l.b16 %v479
      %v1028 = vunpack.c.l.b16 %v480
      %v1029 = vunpack.c.l.b16 %v481
      %v1030 = vunpack.c.l.b16 %v482
      %v1031 = vunpack.c.l.b16 %v483
      %v1032 = vunpack.c.l.b16 %v484
      %v1033 = vunpack.c.l.b16 %v485
      %v1034 = vunpack.c.l.b16 %v486
      %v1035 = vunpack.c.l.b16 %v487
      %v1036 = vunpack.c.l.b16 %v488
      %v1037 = vunpack.c.l.b16 %v489
      %v1038 = vunpack.c.l.b16 %v490
      %v1039 = vunpack.c.l.b16 %v491
      %v1040 = vunpack.c.l.b16 %v492
      %v1041 = vunpack.c.l.b16 %v493
      %v1042 = vunpack.c.l.b16 %v494
      %v1043 = vunpack.c.l.b16 %v495
      %v1044 = vunpack.c.l.b16 %v496
      %v1045 = vunpack.c.l.b16 %v497
      %v1046 = vpack.c.b16 %v791, %v790
      %v1047 = vpack.c.b16 %v793, %v792
      %v1048 = vpack.c.b16 %v795, %v794
      %v1049 = vpack.c.b16 %v797, %v796
      %v1050 = vpack.c.b16 %v799, %v798
      %v1051 = vpack.c.b16 %v801, %v800
      %v1052 = vpack.c.b16 %v803, %v802
      %v1053 = vpack.c.b16 %v805, %v804
      %v1054 = vpack.c.b16 %v807, %v806
      %v1055 = vpack.c.b16 %v809, %v808
      %v1056 = vpack.c.b16 %v811, %v810
      %v1057 = vpack.c.b16 %v813, %v812
      %v1058 = vpack.c.b16 %v815, %v814
      %v1059 = vpack.c.b16 %v817, %v816
      %v1060 = vpack.c.b16 %v819, %v818
      %v1061 = vpack.c.b16 %v821, %v820
      %v1062 = vpack.c.b16 %v823, %v822
      %v1063 = vpack.c.b16 %v825, %v824
      %v1064 = vpack.c.b16 %v827, %v826
      %v1065 = vpack.c.b16 %v829, %v828
      %v1066 = vpack.c.b16 %v831, %v830
      %v1067 = vpack.c.b16 %v833, %v832
      %v1068 = vpack.c.b16 %v835, %v834
      %v1069 = vpack.c.b16 %v837, %v836
      %v1070 = vpack.c.b16 %v839, %v838
      %v1071 = vpack.c.b16 %v841, %v840
      %v1072 = vpack.c.b16 %v843, %v842
      %v1073 = vpack.c.b16 %v845, %v844
      %v1074 = vpack.c.b16 %v847, %v846
      %v1075 = vpack.c.b16 %v849, %v848
      %v1076 = vpack.c.b16 %v851, %v850
      %v1077 = vpack.c.b16 %v853, %v852
      %v1078 = vpack.c.b16 %v855, %v854
      %v1079 = vpack.c.b16 %v857, %v856
      %v1080 = vpack.c.b16 %v859, %v858
      %v1081 = vpack.c.b16 %v861, %v860
      %v1082 = vpack.c.b16 %v863, %v862
      %v1083 = vpack.c.b16 %v865, %v864
      %v1084 = vpack.c.b16 %v867, %v866
      %v1085 = vpack.c.b16 %v869, %v868
      %v1086 = vpack.c.b16 %v871, %v870
      %v1087 = vpack.c.b16 %v873, %v872
      %v1088 = vpack.c.b16 %v875, %v874
      %v1089 = vpack.c.b16 %v877, %v876
      %v1090 = vpack.c.b16 %v879, %v878
      %v1091 = vpack.c.b16 %v881, %v880
      %v1092 = vpack.c.b16 %v883, %v882
      %v1093 = vpack.c.b16 %v885, %v884
      %v1094 = vpack.c.b16 %v887, %v886
      %v1095 = vpack.c.b16 %v889, %v888
      %v1096 = vpack.c.b16 %v891, %v890
      %v1097 = vpack.c.b16 %v893, %v892
      %v1098 = vpack.c.b16 %v895, %v894
      %v1099 = vpack.c.b16 %v897, %v896
      %v1100 = vpack.c.b16 %v899, %v898
      %v1101 = vpack.c.b16 %v901, %v900
      %v1102 = vpack.c.b16 %v903, %v902
      %v1103 = vpack.c.b16 %v905, %v904
      %v1104 = vpack.c.b16 %v907, %v906
      %v1105 = vpack.c.b16 %v909, %v908
      %v1106 = vpack.c.b16 %v911, %v910
      %v1107 = vpack.c.b16 %v913, %v912
      %v1108 = vpack.c.b16 %v915, %v914
      %v1109 = vpack.c.b16 %v917, %v916
      %v1110 = vpack.c.b16 %v919, %v918
      %v1111 = vpack.c.b16 %v921, %v920
      %v1112 = vpack.c.b16 %v923, %v922
      %v1113 = vpack.c.b16 %v925, %v924
      %v1114 = vpack.c.b16 %v927, %v926
      %v1115 = vpack.c.b16 %v929, %v928
      %v1116 = vpack.c.b16 %v931, %v930
      %v1117 = vpack.c.b16 %v933, %v932
      %v1118 = vpack.c.b16 %v935, %v934
      %v1119 = vpack.c.b16 %v937, %v936
      %v1120 = vpack.c.b16 %v939, %v938
      %v1121 = vpack.c.b16 %v941, %v940
      %v1122 = vpack.c.b16 %v943, %v942
      %v1123 = vpack.c.b16 %v945, %v944
      %v1124 = vpack.c.b16 %v947, %v946
      %v1125 = vpack.c.b16 %v949, %v948
      %v1126 = vpack.c.b16 %v951, %v950
      %v1127 = vpack.c.b16 %v953, %v952
      %v1128 = vpack.c.b16 %v955, %v954
      %v1129 = vpack.c.b16 %v957, %v956
      %v1130 = vpack.c.b16 %v959, %v958
      %v1131 = vpack.c.b16 %v961, %v960
      %v1132 = vpack.c.b16 %v963, %v962
      %v1133 = vpack.c.b16 %v965, %v964
      %v1134 = vpack.c.b16 %v967, %v966
      %v1135 = vpack.c.b16 %v969, %v968
      %v1136 = vpack.c.b16 %v971, %v970
      %v1137 = vpack.c.b16 %v973, %v972
      %v1138 = vpack.c.b16 %v975, %v974
      %v1139 = vpack.c.b16 %v977, %v976
      %v1140 = vpack.c.b16 %v979, %v978
      %v1141 = vpack.c.b16 %v981, %v980
      %v1142 = vpack.c.b16 %v983, %v982
      %v1143 = vpack.c.b16 %v985, %v984
      %v1144 = vpack.c.b16 %v987, %v986
      %v1145 = vpack.c.b16 %v989, %v988
      %v1146 = vpack.c.b16 %v991, %v990
      %v1147 = vpack.c.b16 %v993, %v992
      %v1148 = vpack.c.b16 %v995, %v994
      %v1149 = vpack.c.b16 %v997, %v996
      %v1150 = vpack.c.b16 %v999, %v998
      %v1151 = vpack.c.b16 %v1001, %v1000
      %v1152 = vpack.c.b16 %v1003, %v1002
      %v1153 = vpack.c.b16 %v1005, %v1004
      %v1154 = vpack.c.b16 %v1007, %v1006
      %v1155 = vpack.c.b16 %v1009, %v1008
      %v1156 = vpack.c.b16 %v1011, %v1010
      %v1157 = vpack.c.b16 %v1013, %v1012
      %v1158 = vpack.c.b16 %v1015, %v1014
      %v1159 = vpack.c.b16 %v1017, %v1016
      %v1160 = vpack.c.b16 %v1019, %v1018
      %v1161 = vpack.c.b16 %v1021, %v1020
      %v1162 = vpack.c.b16 %v1023, %v1022
      %v1163 = vpack.c.b16 %v1025, %v1024
      %v1164 = vpack.c.b16 %v1027, %v1026
      %v1165 = vpack.c.b16 %v1029, %v1028
      %v1166 = vpack.c.b16 %v1031, %v1030
      %v1167 = vpack.c.b16 %v1033, %v1032
      %v1168 = vpack.c.b16 %v1035, %v1034
      %v1169 = vpack.c.b16 %v1037, %v1036
      %v1170 = vpack.c.b16 %v1039, %v1038
      %v1171 = vpack.c.b16 %v1041, %v1040
      %v1172 = vpack.c.b16 %v1043, %v1042
      %v1173 = vpack.c.b16 %v1045, %v1044
      %1302 = vmatpush.bf16.msra.mxu0 %v1053
      %1303 = vmatpush.bf16.msra.mxu0 %v1052
      %1304 = vmatpush.bf16.msra.mxu0 %v1051
      %1305 = vmatpush.bf16.msra.mxu0 %v1050
      %1306 = vmatpush.bf16.msra.mxu0 %v1049
      %1307 = vmatpush.bf16.msra.mxu0 %v1048
      %1308 = vmatpush.bf16.msra.mxu0 %v1047
      %1309 = vmatpush.bf16.msra.mxu0 %v1046
      %1310 = vmatmul.bf16.gmra.mxu0 %v500
      %v1311 = vpop.f32.mrf.mxu0
      %v1312 = vadd.f32 0.0, %v1311
      %v1313 = vpop.f32.mrf.mxu0
      %1314 = vdwg.mxu0
      %1315 = vmatpush.bf16.msra.mxu0 %v1061
      %1316 = vmatpush.bf16.msra.mxu0 %v1060
      %1317 = vmatpush.bf16.msra.mxu0 %v1059
      %1318 = vmatpush.bf16.msra.mxu0 %v1058
      %1319 = vmatpush.bf16.msra.mxu0 %v1057
      %1320 = vmatpush.bf16.msra.mxu0 %v1056
      %1321 = vmatpush.bf16.msra.mxu0 %v1055
      %1322 = vmatpush.bf16.msra.mxu0 %v1054
      %1323 = vmatmul.bf16.gmra.mxu0 %v501
      %v1324 = vpop.f32.mrf.mxu0
      %v1325 = vadd.f32 %v1312, %v1324
      %v1326 = vpop.f32.mrf.mxu0
      %1327 = vdwg.mxu0
      %1328 = vmatpush.bf16.msra.mxu0 %v1069
      %1329 = vmatpush.bf16.msra.mxu0 %v1068
      %1330 = vmatpush.bf16.msra.mxu0 %v1067
      %1331 = vmatpush.bf16.msra.mxu0 %v1066
      %1332 = vmatpush.bf16.msra.mxu0 %v1065
      %1333 = vmatpush.bf16.msra.mxu0 %v1064
      %1334 = vmatpush.bf16.msra.mxu0 %v1063
      %1335 = vmatpush.bf16.msra.mxu0 %v1062
      %1336 = vmatmul.bf16.gmra.mxu0 %v502
      %v1337 = vpop.f32.mrf.mxu0
      %v1338 = vadd.f32 %v1325, %v1337
      %v1339 = vpop.f32.mrf.mxu0
      %1340 = vdwg.mxu0
      %1341 = vmatpush.bf16.msra.mxu0 %v1077
      %1342 = vmatpush.bf16.msra.mxu0 %v1076
      %1343 = vmatpush.bf16.msra.mxu0 %v1075
      %1344 = vmatpush.bf16.msra.mxu0 %v1074
      %1345 = vmatpush.bf16.msra.mxu0 %v1073
      %1346 = vmatpush.bf16.msra.mxu0 %v1072
      %1347 = vmatpush.bf16.msra.mxu0 %v1071
      %1348 = vmatpush.bf16.msra.mxu0 %v1070
      %1349 = vmatmul.bf16.gmra.mxu0 %v503
      %v1350 = vpop.f32.mrf.mxu0
      %v1351 = vadd.f32 %v1338, %v1350
      %v1352 = vpop.f32.mrf.mxu0
      %1353 = vdwg.mxu0
      %1354 = vmatpush.bf16.msra.mxu0 %v1085
      %1355 = vmatpush.bf16.msra.mxu0 %v1084
      %1356 = vmatpush.bf16.msra.mxu0 %v1083
      %1357 = vmatpush.bf16.msra.mxu0 %v1082
      %1358 = vmatpush.bf16.msra.mxu0 %v1081
      %1359 = vmatpush.bf16.msra.mxu0 %v1080
      %1360 = vmatpush.bf16.msra.mxu0 %v1079
      %1361 = vmatpush.bf16.msra.mxu0 %v1078
      %1362 = vmatmul.bf16.gmra.mxu0 %v504
      %v1363 = vpop.f32.mrf.mxu0
      %v1364 = vadd.f32 %v1351, %v1363
      %v1365 = vpop.f32.mrf.mxu0
      %1366 = vdwg.mxu0
      %1367 = vmatpush.bf16.msra.mxu0 %v1093
      %1368 = vmatpush.bf16.msra.mxu0 %v1092
      %1369 = vmatpush.bf16.msra.mxu0 %v1091
      %1370 = vmatpush.bf16.msra.mxu0 %v1090
      %1371 = vmatpush.bf16.msra.mxu0 %v1089
      %1372 = vmatpush.bf16.msra.mxu0 %v1088
      %1373 = vmatpush.bf16.msra.mxu0 %v1087
      %1374 = vmatpush.bf16.msra.mxu0 %v1086
      %1375 = vmatmul.bf16.gmra.mxu0 %v505
      %v1376 = vpop.f32.mrf.mxu0
      %v1377 = vadd.f32 %v1364, %v1376
      %v1378 = vpop.f32.mrf.mxu0
      %1379 = vdwg.mxu0
      %1380 = vmatpush.bf16.msra.mxu0 %v1101
      %1381 = vmatpush.bf16.msra.mxu0 %v1100
      %1382 = vmatpush.bf16.msra.mxu0 %v1099
      %1383 = vmatpush.bf16.msra.mxu0 %v1098
      %1384 = vmatpush.bf16.msra.mxu0 %v1097
      %1385 = vmatpush.bf16.msra.mxu0 %v1096
      %1386 = vmatpush.bf16.msra.mxu0 %v1095
      %1387 = vmatpush.bf16.msra.mxu0 %v1094
      %1388 = vmatmul.bf16.gmra.mxu0 %v506
      %v1389 = vpop.f32.mrf.mxu0
      %v1390 = vadd.f32 %v1377, %v1389
      %v1391 = vpop.f32.mrf.mxu0
      %1392 = vdwg.mxu0
      %1393 = vmatpush.bf16.msra.mxu0 %v1109
      %1394 = vmatpush.bf16.msra.mxu0 %v1108
      %1395 = vmatpush.bf16.msra.mxu0 %v1107
      %1396 = vmatpush.bf16.msra.mxu0 %v1106
      %1397 = vmatpush.bf16.msra.mxu0 %v1105
      %1398 = vmatpush.bf16.msra.mxu0 %v1104
      %1399 = vmatpush.bf16.msra.mxu0 %v1103
      %1400 = vmatpush.bf16.msra.mxu0 %v1102
      %1401 = vmatmul.bf16.gmra.mxu0 %v507
      %v1402 = vpop.f32.mrf.mxu0
      %v1403 = vadd.f32 %v1390, %v1402
      %v1404 = vpop.f32.mrf.mxu0
      %1405 = vdwg.mxu0
      %1406 = vmatpush.bf16.msra.mxu0 %v1117
      %1407 = vmatpush.bf16.msra.mxu0 %v1116
      %1408 = vmatpush.bf16.msra.mxu0 %v1115
      %1409 = vmatpush.bf16.msra.mxu0 %v1114
      %1410 = vmatpush.bf16.msra.mxu0 %v1113
      %1411 = vmatpush.bf16.msra.mxu0 %v1112
      %1412 = vmatpush.bf16.msra.mxu0 %v1111
      %1413 = vmatpush.bf16.msra.mxu0 %v1110
      %1414 = vmatmul.bf16.gmra.mxu0 %v510
      %v1415 = vpop.f32.mrf.mxu0
      %v1416 = vadd.f32 %v1403, %v1415
      %v1417 = vpop.f32.mrf.mxu0
      %1418 = vdwg.mxu0
      %1419 = vmatpush.bf16.msra.mxu0 %v1125
      %1420 = vmatpush.bf16.msra.mxu0 %v1124
      %1421 = vmatpush.bf16.msra.mxu0 %v1123
      %1422 = vmatpush.bf16.msra.mxu0 %v1122
      %1423 = vmatpush.bf16.msra.mxu0 %v1121
      %1424 = vmatpush.bf16.msra.mxu0 %v1120
      %1425 = vmatpush.bf16.msra.mxu0 %v1119
      %1426 = vmatpush.bf16.msra.mxu0 %v1118
      %1427 = vmatmul.bf16.gmra.mxu0 %v511
      %v1428 = vpop.f32.mrf.mxu0
      %v1429 = vadd.f32 %v1416, %v1428
      %v1430 = vpop.f32.mrf.mxu0
      %1431 = vdwg.mxu0
      %1432 = vmatpush.bf16.msra.mxu0 %v1133
      %1433 = vmatpush.bf16.msra.mxu0 %v1132
      %1434 = vmatpush.bf16.msra.mxu0 %v1131
      %1435 = vmatpush.bf16.msra.mxu0 %v1130
      %1436 = vmatpush.bf16.msra.mxu0 %v1129
      %1437 = vmatpush.bf16.msra.mxu0 %v1128
      %1438 = vmatpush.bf16.msra.mxu0 %v1127
      %1439 = vmatpush.bf16.msra.mxu0 %v1126
      %1440 = vmatmul.bf16.gmra.mxu0 %v512
      %v1441 = vpop.f32.mrf.mxu0
      %v1442 = vadd.f32 %v1429, %v1441
      %v1443 = vpop.f32.mrf.mxu0
      %1444 = vdwg.mxu0
      %1445 = vmatpush.bf16.msra.mxu0 %v1141
      %1446 = vmatpush.bf16.msra.mxu0 %v1140
      %1447 = vmatpush.bf16.msra.mxu0 %v1139
      %1448 = vmatpush.bf16.msra.mxu0 %v1138
      %1449 = vmatpush.bf16.msra.mxu0 %v1137
      %1450 = vmatpush.bf16.msra.mxu0 %v1136
      %1451 = vmatpush.bf16.msra.mxu0 %v1135
      %1452 = vmatpush.bf16.msra.mxu0 %v1134
      %1453 = vmatmul.bf16.gmra.mxu0 %v513
      %v1454 = vpop.f32.mrf.mxu0
      %v1455 = vadd.f32 %v1442, %v1454
      %v1456 = vpop.f32.mrf.mxu0
      %1457 = vdwg.mxu0
      %1458 = vmatpush.bf16.msra.mxu0 %v1149
      %1459 = vmatpush.bf16.msra.mxu0 %v1148
      %1460 = vmatpush.bf16.msra.mxu0 %v1147
      %1461 = vmatpush.bf16.msra.mxu0 %v1146
      %1462 = vmatpush.bf16.msra.mxu0 %v1145
      %1463 = vmatpush.bf16.msra.mxu0 %v1144
      %1464 = vmatpush.bf16.msra.mxu0 %v1143
      %1465 = vmatpush.bf16.msra.mxu0 %v1142
      %1466 = vmatmul.bf16.gmra.mxu0 %v514
      %v1467 = vpop.f32.mrf.mxu0
      %v1468 = vadd.f32 %v1455, %v1467
      %v1469 = vpop.f32.mrf.mxu0
      %1470 = vdwg.mxu0
      %1471 = vmatpush.bf16.msra.mxu0 %v1157
      %1472 = vmatpush.bf16.msra.mxu0 %v1156
      %1473 = vmatpush.bf16.msra.mxu0 %v1155
      %1474 = vmatpush.bf16.msra.mxu0 %v1154
      %1475 = vmatpush.bf16.msra.mxu0 %v1153
      %1476 = vmatpush.bf16.msra.mxu0 %v1152
      %1477 = vmatpush.bf16.msra.mxu0 %v1151
      %1478 = vmatpush.bf16.msra.mxu0 %v1150
      %1479 = vmatmul.bf16.gmra.mxu0 %v515
      %v1480 = vpop.f32.mrf.mxu0
      %v1481 = vadd.f32 %v1468, %v1480
      %v1482 = vpop.f32.mrf.mxu0
      %1483 = vdwg.mxu0
      %1484 = vmatpush.bf16.msra.mxu0 %v1165
      %1485 = vmatpush.bf16.msra.mxu0 %v1164
      %1486 = vmatpush.bf16.msra.mxu0 %v1163
      %1487 = vmatpush.bf16.msra.mxu0 %v1162
      %1488 = vmatpush.bf16.msra.mxu0 %v1161
      %1489 = vmatpush.bf16.msra.mxu0 %v1160
      %1490 = vmatpush.bf16.msra.mxu0 %v1159
      %1491 = vmatpush.bf16.msra.mxu0 %v1158
      %1492 = vmatmul.bf16.gmra.mxu0 %v516
      %v1493 = vpop.f32.mrf.mxu0
      %v1494 = vadd.f32 %v1481, %v1493
      %v1495 = vpop.f32.mrf.mxu0
      %1496 = vdwg.mxu0
      %1497 = vmatpush.bf16.msra.mxu0 %v1173
      %1498 = vmatpush.bf16.msra.mxu0 %v1172
      %1499 = vmatpush.bf16.msra.mxu0 %v1171
      %1500 = vmatpush.bf16.msra.mxu0 %v1170
      %1501 = vmatpush.bf16.msra.mxu0 %v1169
      %1502 = vmatpush.bf16.msra.mxu0 %v1168
      %1503 = vmatpush.bf16.msra.mxu0 %v1167
      %1504 = vmatpush.bf16.msra.mxu0 %v1166
      %1505 = vmatmul.bf16.gmra.mxu0 %v517
      %v1506 = vpop.f32.mrf.mxu0
      %v1507 = vadd.f32 %v1494, %v1506
      %v1508 = vpop.f32.mrf.mxu0
      %1509 = vdwg.mxu0
      %v1510 = vadd.f32 %v239, %v1507
      %vm1511 = vcmask 517120
      %1512 = vst.msk [vmem:[#allocation2] sm:$0x3] %vm1511, %v1510
      %p1513 = scmp.eq.s32.totalorder %s18, 2
      // Predicated region
      $region45: #{predictor_forward.1} parent=39 // pred_check
        %p1514 = pneg %p1513
      $region46: #{predictor_forward.1} parent=39 // pred_check_branch
        %1516 = sbr.rel (%p1514) target = $region48
      $region47: #{predictor_forward.1} parent=39 // pred_region
        %v1517 = vld [vmem:[#allocation2] sm:$0x3]
        %v1518 = vld [vmem:[%s2] sm:$0x1]
        %v1520 = vperm.slane %v1518, 0
        %v1522 = vadd.f32 %v1517, %v1520
        %vm1523 = vcmp.ge.f32.partialorder %v1522, 0.0
        %v1524 = vmul.f32 %v1522, 0.2
        %v1525 = vsel %vm1523, %v1522, %v1524
        %v1526 = vld [vmem:[%s3] sm:$0x1]
        %v1528 = vperm.slane %v1526, 0
        %v1530 = vmul.f32 %v1525, %v1528
        %v1531 = vsel %vm1511, %v1530, 0.0
        %1532 = vadd.xlane.f32.xlu0 %v1531
        %v1533 = vpop.xlane.xlu0 %1532
        %v1534 = vld [vmem:[#allocation3] sm:$0x1]
        %v1536 = vperm.slane %v1534, 0
        %v1538 = vadd.f32 %v1533, %v1536
        %vm1539 = vcmask 1024
        %1540 = vst.msk [vmem:[%s5] sm:$0x3] %vm1539, %v1538
      $region48: #{predictor_forward.1} parent=39 // pred_fallthru
        _
      // Predicated region
      $region49: #{predictor_forward.1} parent=39 // pred_check
        %p1541 = pneg %p146
      $region50: #{predictor_forward.1} parent=39 // pred_check_branch
        %1543 = sbr.rel (%p1541) target = $region52
      $region51: #{predictor_forward.1} parent=39 // pred_region
        _
      $region52: #{predictor_forward.1} parent=39 // pred_fallthru
        _
      // Predicated region
      $region53: #{predictor_forward.1} parent=39 // pred_check
        %p1544 = pneg %p146
      $region54: #{predictor_forward.1} parent=39 // pred_check_branch
        %1546 = sbr.rel (%p1544) target = $region56
      $region55: #{predictor_forward.1} parent=39 // pred_region
        _
      $region56: #{predictor_forward.1} parent=39 // pred_fallthru
        _
    $region40: #{predictor_forward.1} parent=5 // pred_fallthru
      _
    %p1547 = scmp.le.s32.totalorder 2, %s13
    // Predicated region
    $region57: #{predictor_forward.1} parent=5 // pred_check
      %p1548 = pneg %p1547
    $region58: #{predictor_forward.1} parent=5 // pred_check_branch
      %1550 = sbr.rel (%p1548) target = $region60
    $region59: #{predictor_forward.1} parent=5 // pred_region
      %s1551 = ssub.s32 %s13, 2
    $region60: #{predictor_forward.1} parent=5 // pred_fallthru
      _
  $region6: #{predictor_forward.1} parent=0 // loop_footer
    %s17 = sadd.s32 1, %s13
  $region7: #{predictor_forward.1} parent=0 // loop_footer_branch
    %12 = sbr.rel target = $region3
  $region8: #{predictor_forward.1} parent=0 // loop_exit
    _

</llo_original>
